<compile_context>
chip_gen: v5e
topology: v5e:2x2
jax: 0.10.0
libtpu: 0.0.40
codegen_flags: <defaults>
</compile_context>

<pallas_src>
import functools

import jax
import jax.numpy as jnp
import numpy as np
from jax.experimental import pallas as pl
from jax.experimental.pallas import tpu as pltpu


# ---------------------------------------------------------------------------
# Pallas kernel: fused  (Wenc_d @ x + benc_d) -> quantize -> Wdec @ h + bdec
# (channels in sublanes, pixels in lanes)
# ---------------------------------------------------------------------------
def _enc_quant_dec_kernel(x_ref, wenc_ref, benc_ref, wdec_ref, bdec_ref, o_ref,
                          *, scale):
    # x_ref:    (Cin, TN)   tile of pixels for one batch element
    # wenc_ref: (d, Cin)    encoder 1x1-conv weight, pre-sliced to d rows
    # benc_ref: (d, 1)      encoder bias (pre-sliced)
    # wdec_ref: (Cout, d)   selected decoder weight
    # bdec_ref: (Cout, 1)   selected decoder bias
    # o_ref:    (Cout, TN)
    h = jnp.dot(wenc_ref[...], x_ref[...], preferred_element_type=jnp.float32)
    h = h + benc_ref[...]
    # uniform quantizer: round to nearest level of a 1/scale grid
    h = jnp.round(h * scale) / scale
    y = jnp.dot(wdec_ref[...], h, preferred_element_type=jnp.float32)
    y = y + bdec_ref[...]
    o_ref[...] = y.astype(o_ref.dtype)


def single_enc_multi_dec_forward(x_nchw, params, dec_index, *, scale=64.0,
                                 tile_n=8192):
    """Forward pass of SingleEncMultiDec on an NCHW float32 input."""
    wenc, benc, dec_weights, dec_biases, dim_list = params
    d = dim_list[dec_index]

    # Pre-slice encoder params to the d latent channels actually used
    # (bit-identical: the dropped channels only see elementwise ops).
    wenc_d = wenc[:d, :]                   # (d, Cin)
    benc_d = benc[:d, :]                   # (d, 1)
    wdec = dec_weights[dec_index]          # (Cout, d)
    bdec = dec_biases[dec_index]           # (Cout, 1)

    B, Cin, H, W = x_nchw.shape
    Cout = wdec.shape[0]
    HW = H * W

    # NCHW is already channel-major: just flatten the spatial dims (free).
    x3 = x_nchw.reshape(B, Cin, HW)

    # Lane tile: large multiple of 128, capped at the (128-rounded) spatial size.
    tn = min(tile_n, pl.cdiv(HW, 128) * 128)
    hw_pad = pl.cdiv(HW, tn) * tn
    if hw_pad != HW:
        # Ragged spatial size: zero-pad the lane axis, slice the output back.
        x3 = jnp.pad(x3, ((0, 0), (0, 0), (0, hw_pad - HW)))
    n_tiles = hw_pad // tn

    kernel = functools.partial(_enc_quant_dec_kernel, scale=scale)

    out3 = pl.pallas_call(
        kernel,
        out_shape=jax.ShapeDtypeStruct((B, Cout, hw_pad), x_nchw.dtype),
        grid_spec=pltpu.PrefetchScalarGridSpec(
            num_scalar_prefetch=0,
            grid=(B, n_tiles),
            in_specs=[
                pl.BlockSpec((pl.Squeezed(), Cin, tn),
                             lambda b, i: (b, 0, i)),          # x tile
                pl.BlockSpec((d, Cin), lambda b, i: (0, 0)),   # enc weight
                pl.BlockSpec((d, 1), lambda b, i: (0, 0)),     # enc bias
                pl.BlockSpec((Cout, d), lambda b, i: (0, 0)),  # dec weight
                pl.BlockSpec((Cout, 1), lambda b, i: (0, 0)),  # dec bias
            ],
            out_specs=pl.BlockSpec((pl.Squeezed(), Cout, tn),
                                   lambda b, i: (b, 0, i)),
        ),
        compiler_params=pltpu.CompilerParams(
            dimension_semantics=("parallel", "parallel")),
    )(x3, wenc_d, benc_d, wdec, bdec)

    return out3[:, :, :HW].reshape(B, Cout, H, W)


# ---------------------------------------------------------------------------
# Deterministic parameter construction (synthetic — no checkpoint loading)
# Parameters are kept in torch-native 1x1-conv matmul form:
#   encoder weight (L, Cin), bias (L, 1); decoder s: weight (Cout, d_s), bias (Cout, 1)
# ---------------------------------------------------------------------------
def make_params(key, cin, latent, cout, dim_list):
    keys = jax.random.split(key, 2 + 2 * len(dim_list))
    wenc = 0.1 * jax.random.normal(keys[0], (latent, cin), jnp.float32)
    benc = 0.1 * jax.random.normal(keys[1], (latent, 1), jnp.float32)
    dec_weights, dec_biases = [], []
    for s, d in enumerate(dim_list):
        wdec = 0.1 * jax.random.normal(keys[2 + 2 * s], (cout, d), jnp.float32)
        bdec = 0.1 * jax.random.normal(keys[3 + 2 * s], (cout, 1), jnp.float32)
        dec_weights.append(wdec)
        dec_biases.append(bdec)
    return wenc, benc, dec_weights, dec_biases, tuple(dim_list)


def reference_forward(x_nchw, params, dec_index, *, scale=64.0):
    """Pure-JAX reference (mirrors the PyTorch semantics: 1x1 convs over NCHW)."""
    wenc, benc, dec_weights, dec_biases, dim_list = params
    d = dim_list[dec_index]
    B, Cin, H, W = x_nchw.shape
    x3 = x_nchw.reshape(B, Cin, H * W)
    h = jnp.einsum('lc,bcn->bln', wenc, x3) + benc[None]
    h = jnp.round(h * scale) / scale
    h = h[:, :d]
    y = (jnp.einsum('od,bdn->bon', dec_weights[dec_index], h)
         + dec_biases[dec_index][None])
    return y.reshape(B, -1, H, W)


if __name__ == "__main__":
    B, Cin, H, W = 2, 4, 16, 16
    LATENT = 32
    DIM_LIST = [8, 16, 32]
    DEC_INDEX = 1

    key = jax.random.PRNGKey(0)
    kx, kp = jax.random.split(key)
    x = jax.random.normal(kx, (B, Cin, H, W), jnp.float32)
    params = make_params(kp, Cin, LATENT, Cin, DIM_LIST)

    out = single_enc_multi_dec_forward(x, params, DEC_INDEX)
    out = jax.block_until_ready(out)

    ref = reference_forward(x, params, DEC_INDEX)
    assert out.shape == (B, Cin, H, W)
    np.testing.assert_allclose(np.asarray(out), np.asarray(ref),
                               rtol=1e-5, atol=1e-5)
    print("KERNEL_OK")
</pallas_src>

<mosaic_0001>
module attributes {stable_mosaic.version = 11 : i64} {
  func.func @_enc_quant_dec_kernel(%arg0: i32, %arg1: i32, %arg2: memref<1x4x256xf32, #tpu.memory_space<vmem>>, %arg3: memref<16x4xf32, #tpu.memory_space<vmem>>, %arg4: memref<16x1xf32, #tpu.memory_space<vmem>>, %arg5: memref<4x16xf32, #tpu.memory_space<vmem>>, %arg6: memref<4x1xf32, #tpu.memory_space<vmem>>, %arg7: memref<1x4x256xf32, #tpu.memory_space<vmem>>) attributes {dimension_semantics = [#tpu.dimension_semantics<parallel>, #tpu.dimension_semantics<parallel>], iteration_bounds = array<i64: 2, 1>, scalar_prefetch = 0 : i64, scratch_operands = 0 : i64, tpu.core_type = #tpu.core_type<tc>, window_params = [{transform_indices = @transform_0, window_bounds = array<i64: 1, 4, 256>}, {pipeline_mode = #tpu.pipeline_mode<synchronous>, transform_indices = @transform_1, window_bounds = array<i64: 16, 4>}, {pipeline_mode = #tpu.pipeline_mode<synchronous>, transform_indices = @transform_2, window_bounds = array<i64: 16, 1>}, {pipeline_mode = #tpu.pipeline_mode<synchronous>, transform_indices = @transform_3, window_bounds = array<i64: 4, 16>}, {pipeline_mode = #tpu.pipeline_mode<synchronous>, transform_indices = @transform_4, window_bounds = array<i64: 4, 1>}, {transform_indices = @transform_5, window_bounds = array<i64: 1, 4, 256>}]} {
    %c0 = arith.constant 0 : index
    %c0_0 = arith.constant 0 : index
    %0 = vector.load %arg3[%c0, %c0_0] : memref<16x4xf32, #tpu.memory_space<vmem>>, vector<16x4xf32>
    %c0_1 = arith.constant 0 : index
    %c0_2 = arith.constant 0 : index
    %c0_3 = arith.constant 0 : index
    %1 = vector.load %arg2[%c0_1, %c0_2, %c0_3] : memref<1x4x256xf32, #tpu.memory_space<vmem>>, vector<1x4x256xf32>
    %2 = vector.shape_cast %1 : vector<1x4x256xf32> to vector<4x256xf32>
    %cst = arith.constant dense<0.000000e+00> : vector<16x256xf32>
    %3 = tpu.matmul %0, %2, %cst {dimension_numbers = #tpu.dot_dimension_numbers<[1], [0], [0], [1], [0, 0, 1, 1], [], []>} : vector<16x4xf32>, vector<4x256xf32>, vector<16x256xf32> -> vector<16x256xf32>
    %c0_4 = arith.constant 0 : index
    %c0_5 = arith.constant 0 : index
    %4 = vector.load %arg4[%c0_4, %c0_5] : memref<16x1xf32, #tpu.memory_space<vmem>>, vector<16x1xf32>
    %5 = vector.broadcast %4 : vector<16x1xf32> to vector<16x256xf32>
    %6 = arith.addf %3, %5 : vector<16x256xf32>
    %cst_6 = arith.constant 6.400000e+01 : f32
    %7 = vector.broadcast %cst_6 : f32 to vector<16x256xf32>
    %8 = arith.mulf %6, %7 : vector<16x256xf32>
    %9 = math.roundeven %8 : vector<16x256xf32>
    %cst_7 = arith.constant 6.400000e+01 : f32
    %10 = vector.broadcast %cst_7 : f32 to vector<16x256xf32>
    %11 = arith.divf %9, %10 : vector<16x256xf32>
    %c0_8 = arith.constant 0 : index
    %c0_9 = arith.constant 0 : index
    %12 = vector.load %arg5[%c0_8, %c0_9] : memref<4x16xf32, #tpu.memory_space<vmem>>, vector<4x16xf32>
    %cst_10 = arith.constant dense<0.000000e+00> : vector<4x256xf32>
    %13 = tpu.matmul %12, %11, %cst_10 {dimension_numbers = #tpu.dot_dimension_numbers<[1], [0], [0], [1], [0, 0, 1, 1], [], []>} : vector<4x16xf32>, vector<16x256xf32>, vector<4x256xf32> -> vector<4x256xf32>
    %c0_11 = arith.constant 0 : index
    %c0_12 = arith.constant 0 : index
    %14 = vector.load %arg6[%c0_11, %c0_12] : memref<4x1xf32, #tpu.memory_space<vmem>>, vector<4x1xf32>
    %15 = vector.broadcast %14 : vector<4x1xf32> to vector<4x256xf32>
    %16 = arith.addf %13, %15 : vector<4x256xf32>
    %c0_13 = arith.constant 0 : index
    %c0_14 = arith.constant 0 : index
    %c0_15 = arith.constant 0 : index
    %17 = vector.load %arg7[%c0_13, %c0_14, %c0_15] : memref<1x4x256xf32, #tpu.memory_space<vmem>>, vector<1x4x256xf32>
    %18 = vector.shape_cast %17 : vector<1x4x256xf32> to vector<4x256xf32>
    %19 = vector.shape_cast %16 : vector<4x256xf32> to vector<1x4x256xf32>
    tpu.vector_store %arg7[%c0_13, %c0_14, %c0_15], %19 {strides = array<i32>} : memref<1x4x256xf32, #tpu.memory_space<vmem>>, vector<1x4x256xf32>,
    return
  }
  func.func @transform_0(%arg0: i32, %arg1: i32) -> (i32, i32, i32) {
    %c0_i32 = arith.constant 0 : i32
    %c0_i32_0 = arith.constant 0 : i32
    return %arg0, %c0_i32, %arg1 : i32, i32, i32
  }
  func.func @transform_1(%arg0: i32, %arg1: i32) -> (i32, i32) {
    %c0_i32 = arith.constant 0 : i32
    %c0_i32_0 = arith.constant 0 : i32
    %c0_i32_1 = arith.constant 0 : i32
    return %c0_i32, %c0_i32_0 : i32, i32
  }
  func.func @transform_2(%arg0: i32, %arg1: i32) -> (i32, i32) {
    %c0_i32 = arith.constant 0 : i32
    %c0_i32_0 = arith.constant 0 : i32
    %c0_i32_1 = arith.constant 0 : i32
    return %c0_i32, %c0_i32_0 : i32, i32
  }
  func.func @transform_3(%arg0: i32, %arg1: i32) -> (i32, i32) {
    %c0_i32 = arith.constant 0 : i32
    %c0_i32_0 = arith.constant 0 : i32
    %c0_i32_1 = arith.constant 0 : i32
    return %c0_i32, %c0_i32_0 : i32, i32
  }
  func.func @transform_4(%arg0: i32, %arg1: i32) -> (i32, i32) {
    %c0_i32 = arith.constant 0 : i32
    %c0_i32_0 = arith.constant 0 : i32
    %c0_i32_1 = arith.constant 0 : i32
    return %c0_i32, %c0_i32_0 : i32, i32
  }
  func.func @transform_5(%arg0: i32, %arg1: i32) -> (i32, i32, i32) {
    %c0_i32 = arith.constant 0 : i32
    %c0_i32_0 = arith.constant 0 : i32
    return %arg0, %c0_i32, %arg1 : i32, i32, i32
  }
}

</mosaic_0001>

<llo_original>
// kernel: tpu_custom_call.1
$region0: #{tpu_custom_call.1}
  #allocation0 [shape = 'u32[]', space=smem, size = 0x4, offset = 0x4, fixed_abs, tag = 'smem constant byte address 0x4 - core index']
  #allocation1 [shape = 'u32[72,128]{1,0:T(1,128)}', space=vmem, size = 0x9000, scoped, tag = 'internal scratch']
  %s0 = inlined_call_operand.vmem [shape: f32[2,4,256], index: 0, kind: input, shape index: {}]
  %s1 = inlined_call_operand.vmem [shape: f32[16,4], index: 1, kind: input, shape index: {}]
  %s2 = inlined_call_operand.vmem [shape: f32[16,1], index: 2, kind: input, shape index: {}]
  %s3 = inlined_call_operand.vmem [shape: f32[4,16], index: 3, kind: input, shape index: {}]
  %s4 = inlined_call_operand.vmem [shape: f32[4,1], index: 4, kind: input, shape index: {}]
  %s5 = inlined_call_operand.hbm [shape: f32[2,4,256], index: 5, kind: output, shape index: {}]
  %s6 = sld [smem:[#allocation0]]
  $region53: #{tpu_custom_call.1} parent=0
    _
  %s8 = ssub.s32 1, %s6
  %s9 = scalar_select 0, %s8, %s6
  $region1: #{tpu_custom_call.1} parent=0
    #allocation2 [shape = 'u8[8192]{0}', space=vmem, size = 0x2000, scoped, tag = 'output window, operand 0']
    #allocation3 [shape = 's32[2]{0}', space=sflag, size = 0x8, scoped, tag = 'scoped memory for tpu_custom_call.1']
    %10 = vsyncpa [#allocation3], 0
    %s11 = scalar_lea.sflag [#allocation3], 1
    %12 = vsyncpa %s11, 0
    loop: start=0, step=1, limit=4
    $region2: #{tpu_custom_call.1} parent=1 // loop_pre_header
      _
    $region3: #{tpu_custom_call.1} parent=1 // loop_header
      %s14 = sphi 0, %s18
      %p15 = scmp.ge.s32.totalorder %s14, 4
      %s21 = sphi 0, %s33
      %s22 = sphi 0, %s29
      %s23 = sphi 0, %s21
      %s24 = sphi 0, %s22
      %s25 = sphi 0, %s23
      %s26 = sphi 0, %s24
      %s38 = sphi 0, %s40
      %s41 = sphi 0, %s38
      %s42 = sphi 0, %s41
      %s58 = sphi 0, %s42
      %s62 = sphi 0, %s62
      %s64 = sphi 0, %s62
      %s65 = sphi 0, %s64
      %s79 = sphi 0, %s65
      %s83 = sphi 0, %s83
      %s85 = sphi 0, %s83
      %s86 = sphi 0, %s85
      %s100 = sphi 0, %s86
      %s104 = sphi 0, %s104
      %s106 = sphi 0, %s104
      %s107 = sphi 0, %s106
      %s121 = sphi 0, %s107
      %s125 = sphi 0, %s125
      %s127 = sphi 0, %s125
      %s128 = sphi 0, %s127
      %s142 = sphi 0, %s128
      %s150 = sphi 0, %s152
      %s153 = sphi 0, %s150
      %s154 = sphi 0, %s153
      %s170 = sphi 0, %s154
    $region4: #{tpu_custom_call.1} parent=1 // loop_header_branch
      %17 = sbr.rel (%p15) target = $region8
    $region5: #{tpu_custom_call.1} parent=1 // loop_body
      %s19 = ssub.s32 %s14, 1
      %s20 = ssub.s32 %s14, 2
      %s27 = sadd.s32 1, %s22
      %p28 = scmp.ge.s32.totalorder %s27, 1
      %s29 = scalar_select %p28, 0, %s27
      %s30 = sadd.s32 1, %s21
      %s31 = scalar_select %p28, %s30, %s21
      %p32 = scmp.ge.s32.totalorder %s31, 2
      %s33 = scalar_select %p32, 0, %s31
      %s34 = ssub.s32 %s21, %s33
      %s35 = ssub.s32 %s22, %s29
      %s36 = sor.u32 %s34, %s35
      %p37 = scmp.eq.s32.totalorder %s36, 0
      %s39 = sadd.s32 %s38, 1
      %s40 = scalar_select %p37, %s38, %s39
      %p43 = pneg %p37
      %p44 = scmp.eq.s32.totalorder %s14, 1
      %p45 = por %p43, %p44
      %p46 = scmp.ne.s32.totalorder %s38, %s41
      %p47 = scmp.eq.s32.totalorder %s14, 0
      %p48 = por %p46, %p47
      %p49 = scmp.ne.s32.totalorder %s38, %s41
      %p50 = scmp.eq.s32.totalorder %s19, 1
      %p51 = por %p49, %p50
      %p52 = scmp.ne.s32.totalorder %s41, %s42
      %p53 = scmp.eq.s32.totalorder %s19, 0
      %p54 = por %p52, %p53
      %p55 = scmp.ne.s32.totalorder %s41, %s42
      %p56 = scmp.eq.s32.totalorder %s20, 1
      %p57 = por %p55, %p56
      %p59 = scmp.ne.s32.totalorder %s42, %s58
      %p60 = scmp.eq.s32.totalorder %s20, 0
      %p61 = por %p59, %p60
      %s63 = sadd.s32 %s62, 1
      %p66 = scmp.eq.s32.totalorder %s14, 1
      %p67 = scmp.ne.s32.totalorder %s62, %s64
      %p68 = scmp.eq.s32.totalorder %s14, 0
      %p69 = por %p67, %p68
      %p70 = scmp.ne.s32.totalorder %s62, %s64
      %p71 = scmp.eq.s32.totalorder %s19, 1
      %p72 = por %p70, %p71
      %p73 = scmp.ne.s32.totalorder %s64, %s65
      %p74 = scmp.eq.s32.totalorder %s19, 0
      %p75 = por %p73, %p74
      %p76 = scmp.ne.s32.totalorder %s64, %s65
      %p77 = scmp.eq.s32.totalorder %s20, 1
      %p78 = por %p76, %p77
      %p80 = scmp.ne.s32.totalorder %s65, %s79
      %p81 = scmp.eq.s32.totalorder %s20, 0
      %p82 = por %p80, %p81
      %s84 = sadd.s32 %s83, 1
      %p87 = scmp.eq.s32.totalorder %s14, 1
      %p88 = scmp.ne.s32.totalorder %s83, %s85
      %p89 = scmp.eq.s32.totalorder %s14, 0
      %p90 = por %p88, %p89
      %p91 = scmp.ne.s32.totalorder %s83, %s85
      %p92 = scmp.eq.s32.totalorder %s19, 1
      %p93 = por %p91, %p92
      %p94 = scmp.ne.s32.totalorder %s85, %s86
      %p95 = scmp.eq.s32.totalorder %s19, 0
      %p96 = por %p94, %p95
      %p97 = scmp.ne.s32.totalorder %s85, %s86
      %p98 = scmp.eq.s32.totalorder %s20, 1
      %p99 = por %p97, %p98
      %p101 = scmp.ne.s32.totalorder %s86, %s100
      %p102 = scmp.eq.s32.totalorder %s20, 0
      %p103 = por %p101, %p102
      %s105 = sadd.s32 %s104, 1
      %p108 = scmp.eq.s32.totalorder %s14, 1
      %p109 = scmp.ne.s32.totalorder %s104, %s106
      %p110 = scmp.eq.s32.totalorder %s14, 0
      %p111 = por %p109, %p110
      %p112 = scmp.ne.s32.totalorder %s104, %s106
      %p113 = scmp.eq.s32.totalorder %s19, 1
      %p114 = por %p112, %p113
      %p115 = scmp.ne.s32.totalorder %s106, %s107
      %p116 = scmp.eq.s32.totalorder %s19, 0
      %p117 = por %p115, %p116
      %p118 = scmp.ne.s32.totalorder %s106, %s107
      %p119 = scmp.eq.s32.totalorder %s20, 1
      %p120 = por %p118, %p119
      %p122 = scmp.ne.s32.totalorder %s107, %s121
      %p123 = scmp.eq.s32.totalorder %s20, 0
      %p124 = por %p122, %p123
      %s126 = sadd.s32 %s125, 1
      %p129 = scmp.eq.s32.totalorder %s14, 1
      %p130 = scmp.ne.s32.totalorder %s125, %s127
      %p131 = scmp.eq.s32.totalorder %s14, 0
      %p132 = por %p130, %p131
      %p133 = scmp.ne.s32.totalorder %s125, %s127
      %p134 = scmp.eq.s32.totalorder %s19, 1
      %p135 = por %p133, %p134
      %p136 = scmp.ne.s32.totalorder %s127, %s128
      %p137 = scmp.eq.s32.totalorder %s19, 0
      %p138 = por %p136, %p137
      %p139 = scmp.ne.s32.totalorder %s127, %s128
      %p140 = scmp.eq.s32.totalorder %s20, 1
      %p141 = por %p139, %p140
      %p143 = scmp.ne.s32.totalorder %s128, %s142
      %p144 = scmp.eq.s32.totalorder %s20, 0
      %p145 = por %p143, %p144
      %s146 = ssub.s32 %s21, %s33
      %s147 = ssub.s32 %s22, %s29
      %s148 = sor.u32 %s146, %s147
      %p149 = scmp.eq.s32.totalorder %s148, 0
      %s151 = sadd.s32 %s150, 1
      %s152 = scalar_select %p149, %s150, %s151
      %p155 = pneg %p149
      %p156 = scmp.eq.s32.totalorder %s14, 1
      %p157 = por %p155, %p156
      %p158 = scmp.ne.s32.totalorder %s150, %s153
      %p159 = scmp.eq.s32.totalorder %s14, 0
      %p160 = por %p158, %p159
      %p161 = scmp.ne.s32.totalorder %s150, %s153
      %p162 = scmp.eq.s32.totalorder %s19, 1
      %p163 = por %p161, %p162
      %p164 = scmp.ne.s32.totalorder %s153, %s154
      %p165 = scmp.eq.s32.totalorder %s19, 0
      %p166 = por %p164, %p165
      %p167 = scmp.ne.s32.totalorder %s153, %s154
      %p168 = scmp.eq.s32.totalorder %s20, 1
      %p169 = por %p167, %p168
      %p171 = scmp.ne.s32.totalorder %s154, %s170
      %p172 = scmp.eq.s32.totalorder %s20, 0
      %p173 = por %p171, %p172
      %p174 = scmp.le.s32.totalorder 1, %s14
      %p175 = scmp.lt.s32.totalorder %s14, 3
      %p176 = pnand %p174, %p175
      %p177 = pneg %p176
      // Predicated region
      $region9: #{tpu_custom_call.1} parent=5 // pred_check
        _
      $region10: #{tpu_custom_call.1} parent=5 // pred_check_branch
        %179 = sbr.rel (%p176) target = $region12
      $region11: #{tpu_custom_call.1} parent=5 // pred_region
        %s180 = ssub.s32 %s14, 1
        // Predicated region
        $region13: #{tpu_custom_call.1} parent=11 // pred_check
          %p181 = pneg %p75
        $region14: #{tpu_custom_call.1} parent=11 // pred_check_branch
          %183 = sbr.rel (%p181) target = $region16
        $region15: #{tpu_custom_call.1} parent=11 // pred_region
          _
        $region16: #{tpu_custom_call.1} parent=11 // pred_fallthru
          _
        // Predicated region
        $region17: #{tpu_custom_call.1} parent=11 // pred_check
          %p184 = pneg %p96
        $region18: #{tpu_custom_call.1} parent=11 // pred_check_branch
          %186 = sbr.rel (%p184) target = $region20
        $region19: #{tpu_custom_call.1} parent=11 // pred_region
          _
        $region20: #{tpu_custom_call.1} parent=11 // pred_fallthru
          _
        // Predicated region
        $region21: #{tpu_custom_call.1} parent=11 // pred_check
          %p187 = pneg %p117
        $region22: #{tpu_custom_call.1} parent=11 // pred_check_branch
          %189 = sbr.rel (%p187) target = $region24
        $region23: #{tpu_custom_call.1} parent=11 // pred_region
          _
        $region24: #{tpu_custom_call.1} parent=11 // pred_fallthru
          _
        // Predicated region
        $region25: #{tpu_custom_call.1} parent=11 // pred_check
          %p190 = pneg %p138
        $region26: #{tpu_custom_call.1} parent=11 // pred_check_branch
          %192 = sbr.rel (%p190) target = $region28
        $region27: #{tpu_custom_call.1} parent=11 // pred_region
          _
        $region28: #{tpu_custom_call.1} parent=11 // pred_fallthru
          _
      $region12: #{tpu_custom_call.1} parent=5 // pred_fallthru
        _
      %p193 = scmp.lt.s32.totalorder %s14, 2
      // Predicated region
      $region29: #{tpu_custom_call.1} parent=5 // pred_check
        %p194 = pneg %p193
      $region30: #{tpu_custom_call.1} parent=5 // pred_check_branch
        %196 = sbr.rel (%p194) target = $region32
      $region31: #{tpu_custom_call.1} parent=5 // pred_region
        // Predicated region
        $region33: #{tpu_custom_call.1} parent=31 // pred_check
          %p197 = pneg %p48
        $region34: #{tpu_custom_call.1} parent=31 // pred_check_branch
          %199 = sbr.rel (%p197) target = $region36
        $region35: #{tpu_custom_call.1} parent=31 // pred_region
          %s200 = smul.u32 2, %s22
          %p201 = scmp.lt.s32.totalorder %s21, 1
          %s202 = scalar_select %p201, %s21, 1
          %p203 = scmp.lt.s32.totalorder %s200, 1
          %s204 = scalar_select %p203, %s200, 1
          %s205 = smul.addr %s202, 2
          %s206 = sadd.s32 %s204, %s205
          %s207 = smul.addr %s206, 4
          %s208 = scalar_lea.vmem %s0, %s207
          %s209 = smul.u32 2, %s22
        $region36: #{tpu_custom_call.1} parent=31 // pred_fallthru
          _
      $region32: #{tpu_custom_call.1} parent=5 // pred_fallthru
        _
      %p210 = scmp.le.s32.totalorder 1, %s14
      %p211 = scmp.lt.s32.totalorder %s14, 3
      %p212 = pnand %p210, %p211
      %p213 = pneg %p212
      // Predicated region
      $region37: #{tpu_custom_call.1} parent=5 // pred_check
        _
      $region38: #{tpu_custom_call.1} parent=5 // pred_check_branch
        %215 = sbr.rel (%p212) target = $region40
      $region39: #{tpu_custom_call.1} parent=5 // pred_region
        %s216 = ssub.s32 %s14, 1
        %s217 = smul.u32 2, %s24
        %p218 = scmp.lt.s32.totalorder %s23, 1
        %s219 = scalar_select %p218, %s23, 1
        %p220 = scmp.lt.s32.totalorder %s217, 1
        %s221 = scalar_select %p220, %s217, 1
        %s222 = smul.addr %s219, 2
        %s223 = sadd.s32 %s221, %s222
        %s224 = smul.addr %s223, 4
        %s225 = scalar_lea.vmem %s0, %s224
        %p226 = pneg %p54
        %p227 = pneg %p51
        %p228 = pneg %p75
        %p229 = pneg %p72
        %p230 = pneg %p96
        %p231 = pneg %p93
        %p232 = pneg %p117
        %p233 = pneg %p114
        %p234 = pneg %p138
        %p235 = pneg %p135
        %p236 = pneg %p166
        %p237 = pneg %p163
        %s238 = sand.u32 %s153, 1
        %s239 = scalar_lea.sflag [#allocation3], %s238
        %s240 = sand.u32 %s153, 1
        %s241 = smul.addr %s240, 8
        %s242 = scalar_lea.vmem [#allocation2], %s241
        %s243 = smul.u32 2, %s24
        %p244 = scmp.lt.s32.totalorder %s23, 1
        %s245 = scalar_select %p244, %s23, 1
        %p246 = scmp.lt.s32.totalorder %s243, 1
        %s247 = scalar_select %p246, %s243, 1
        %s248 = smul.addr %s245, 2
        %s249 = sadd.s32 %s247, %s248
        %s250 = smul.addr %s249, 4
        %s251 = scalar_lea.vmem %s0, %s250
        %s252 = smul.u32 2, %s24
        %s253 = smul.u32 2, %s24
        %v254 = vld [vmem:[%s1] sm:$0xff]
        %v255 = vld [vmem:[%s1 + $0x8] sm:$0xff]
        %v256 = vld [vmem:[%s251] sm:$0xff]
        %v257 = vld [vmem:[%s2] sm:$0xff]
        %v258 = vld [vmem:[%s2 + $0x8] sm:$0xff]
        %260 = vset.pattern.permute.xlu0 0
        %261 = vperm.xlu0 %260, %v257
        %v262 = vpop.permute.xlu0 %261
        %265 = vset.pattern.permute.xlu0 0
        %266 = vperm.xlu0 %265, %v258
        %v267 = vpop.permute.xlu0 %266
        %270 = vst [vmem:[#allocation1] ss:$2 sm:$0xff] %v256
        %v271 = vld.sshfl [vmem:[#allocation1] sm:$0xff pattern:$0x75316420]
        %v272 = vld.sshfl [vmem:[#allocation1 + $0x8] sm:$0xff pattern:$0x75316420]
        %vm273 = vcmask 31744
        %v275 = vsel %vm273, %v254, 0
        %v278 = vsel %vm273, %v255, 0
        %vm280 = vcmask 1043456
        %v281 = vsel %vm280, %v271, 0
        %v283 = vsel %vm280, %v272, 0
        %285 = vmatpush.msra.mxu0 0.0
        %286 = vmatpush.msra.mxu0 0.0
        %287 = vmatpush.msra.mxu0 0.0
        %288 = vmatpush.msra.mxu0 0.0
        %289 = vmatpush.msra.mxu0 0.0
        %290 = vmatpush.msra.mxu0 0.0
        %291 = vmatpush.msra.mxu0 0.0
        %292 = vmatpush.msra.mxu0 0.0
        %293 = vmatpush.msra.mxu0 0.0
        %294 = vmatpush.msra.mxu0 0.0
        %295 = vmatpush.msra.mxu0 0.0
        %296 = vmatpush.msra.mxu0 0.0
        %297 = vmatpush.msra.mxu0 0.0
        %298 = vmatpush.msra.mxu0 0.0
        %299 = vmatpush.msra.mxu0 0.0
        %300 = vmatpush.msra.mxu0 %v281
        %301 = vmatmul.f32.gmra.mxu0 %v275
        %v302 = vpop.f32.mrf.mxu0
        %v303 = vadd.f32 %v262, %v302
        %304 = vmatmul.f32.gmra.mxu0 %v278
        %v305 = vpop.f32.mrf.mxu0
        %v306 = vadd.f32 %v267, %v305
        %307 = vdwg.mxu0
        %308 = vmatpush.msra.mxu0 0.0
        %309 = vmatpush.msra.mxu0 0.0
        %310 = vmatpush.msra.mxu0 0.0
        %311 = vmatpush.msra.mxu0 0.0
        %312 = vmatpush.msra.mxu0 0.0
        %313 = vmatpush.msra.mxu0 0.0
        %314 = vmatpush.msra.mxu0 0.0
        %315 = vmatpush.msra.mxu0 0.0
        %316 = vmatpush.msra.mxu0 0.0
        %317 = vmatpush.msra.mxu0 0.0
        %318 = vmatpush.msra.mxu0 0.0
        %319 = vmatpush.msra.mxu0 0.0
        %320 = vmatpush.msra.mxu0 0.0
        %321 = vmatpush.msra.mxu0 0.0
        %322 = vmatpush.msra.mxu0 0.0
        %323 = vmatpush.msra.mxu0 %v283
        %324 = vmatmul.f32.gmra.mxu0 %v275
        %v325 = vpop.f32.mrf.mxu0
        %v326 = vadd.f32 %v262, %v325
        %327 = vmatmul.f32.gmra.mxu0 %v278
        %v328 = vpop.f32.mrf.mxu0
        %v329 = vadd.f32 %v267, %v328
        %330 = vdwg.mxu0
        %v331 = vmul.f32 %v303, 64.0
        %v332 = vmul.f32 %v326, 64.0
        %v333 = vmul.f32 %v306, 64.0
        %v334 = vmul.f32 %v329, 64.0
        %v335 = vround.ne.pseudo %v331
        %v336 = vround.ne.pseudo %v332
        %v337 = vround.ne.pseudo %v333
        %v338 = vround.ne.pseudo %v334
        %v339 = vrcp.pop 64.0
        %v340 = vmul.f32 64.0, %v339
        %v341 = vsub.f32 1.0, %v340
        %v342 = vmul.f32 %v339, %v341
        %v343 = vadd.f32 %v339, %v342
        %vm344 = vweird.f32 %v339
        %v345 = vsel %vm344, %v339, %v343
        %v346 = vmul.f32 %v335, %v345
        %v347 = vmul.f32 %v336, %v345
        %v348 = vmul.f32 %v337, %v345
        %v349 = vmul.f32 %v338, %v345
        %v350 = vld [vmem:[%s3] sm:$0xf]
        %v351 = vld [vmem:[%s4] sm:$0xf]
        %353 = vset.pattern.permute.xlu0 0
        %354 = vperm.xlu0 %353, %v351
        %v355 = vpop.permute.xlu0 %354
        %vm357 = vcmask 130048
        %v359 = vsel %vm357, %v350, 0
        %361 = vmatpush.msra.mxu0 0.0
        %362 = vmatpush.msra.mxu0 0.0
        %363 = vmatpush.msra.mxu0 0.0
        %364 = vmatpush.msra.mxu0 0.0
        %365 = vmatpush.msra.mxu0 0.0
        %366 = vmatpush.msra.mxu0 0.0
        %367 = vmatpush.msra.mxu0 0.0
        %368 = vmatpush.msra.mxu0 0.0
        %369 = vmatpush.msra.mxu0 0.0
        %370 = vmatpush.msra.mxu0 0.0
        %371 = vmatpush.msra.mxu0 0.0
        %372 = vmatpush.msra.mxu0 0.0
        %373 = vmatpush.msra.mxu0 0.0
        %374 = vmatpush.msra.mxu0 0.0
        %375 = vmatpush.msra.mxu0 %v348
        %376 = vmatpush.msra.mxu0 %v346
        %377 = vmatmul.f32.gmra.mxu0 %v359
        %v378 = vpop.f32.mrf.mxu0
        %v379 = vadd.f32 %v355, %v378
        %380 = vdwg.mxu0
        %381 = vmatpush.msra.mxu0 0.0
        %382 = vmatpush.msra.mxu0 0.0
        %383 = vmatpush.msra.mxu0 0.0
        %384 = vmatpush.msra.mxu0 0.0
        %385 = vmatpush.msra.mxu0 0.0
        %386 = vmatpush.msra.mxu0 0.0
        %387 = vmatpush.msra.mxu0 0.0
        %388 = vmatpush.msra.mxu0 0.0
        %389 = vmatpush.msra.mxu0 0.0
        %390 = vmatpush.msra.mxu0 0.0
        %391 = vmatpush.msra.mxu0 0.0
        %392 = vmatpush.msra.mxu0 0.0
        %393 = vmatpush.msra.mxu0 0.0
        %394 = vmatpush.msra.mxu0 0.0
        %395 = vmatpush.msra.mxu0 %v349
        %396 = vmatpush.msra.mxu0 %v347
        %397 = vmatmul.f32.gmra.mxu0 %v359
        %v398 = vpop.f32.mrf.mxu0
        %v399 = vadd.f32 %v355, %v398
        %400 = vdwg.mxu0
        %v403 = vrot.slane %v399, 4
        %v404 = vsel %vm280, %v379, %v403
        %406 = vst [vmem:[%s242] sm:$0xff] %v404
        %s407 = sand.u32 %s153, 1
        %s408 = scalar_lea.sflag [#allocation3], %s407
        %s409 = sand.u32 %s153, 1
        %s410 = smul.addr %s409, 8
        %s411 = scalar_lea.vmem [#allocation2], %s410
        // Predicated region
        $region41: #{tpu_custom_call.1} parent=39 // pred_check
          %p412 = pneg %p163
        $region42: #{tpu_custom_call.1} parent=39 // pred_check_branch
          %414 = sbr.rel (%p412) target = $region44
        $region43: #{tpu_custom_call.1} parent=39 // pred_region
          %s415 = smul.u32 2, %s24
          %417 = vsyncadd %s408, 0
          %s418 = smul.addr %s23, 2
          %s419 = sadd.s32 %s415, %s418
          %s420 = smul.addr %s419, 4
          %s421 = scalar_lea.hbm %s5, %s420
          %s423 = sshll.u32 %s411, 4
          %s424 = int_to_ptr.vmem [resolvable:$true] %s423
          %s425 = sshll.u32 %s421, 4
          %s426 = int_to_ptr.hbm [resolvable:$true] %s425
          %428 = dma.vmem_to_hbm [thread:$0]  %s424, 128, %s426, %s408
        $region44: #{tpu_custom_call.1} parent=39 // pred_fallthru
          _
      $region40: #{tpu_custom_call.1} parent=5 // pred_fallthru
        _
      %p429 = scmp.le.s32.totalorder 2, %s14
      // Predicated region
      $region45: #{tpu_custom_call.1} parent=5 // pred_check
        %p430 = pneg %p429
      $region46: #{tpu_custom_call.1} parent=5 // pred_check_branch
        %432 = sbr.rel (%p430) target = $region48
      $region47: #{tpu_custom_call.1} parent=5 // pred_region
        %s433 = ssub.s32 %s14, 2
        // Predicated region
        $region49: #{tpu_custom_call.1} parent=47 // pred_check
          %p434 = pneg %p169
        $region50: #{tpu_custom_call.1} parent=47 // pred_check_branch
          %436 = sbr.rel (%p434) target = $region52
        $region51: #{tpu_custom_call.1} parent=47 // pred_region
          %s437 = sand.u32 %s154, 1
          %s438 = scalar_lea.sflag [#allocation3], %s437
          %s439 = sand.u32 %s154, 1
          %s440 = smul.addr %s439, 8
          %s441 = scalar_lea.vmem [#allocation2], %s440
          %443 = dma.done %s438, 128
        $region52: #{tpu_custom_call.1} parent=47 // pred_fallthru
          _
      $region48: #{tpu_custom_call.1} parent=5 // pred_fallthru
        _
    $region6: #{tpu_custom_call.1} parent=1 // loop_footer
      %s18 = sadd.s32 1, %s14
    $region7: #{tpu_custom_call.1} parent=1 // loop_footer_branch
      %13 = sbr.rel target = $region3
    $region8: #{tpu_custom_call.1} parent=1 // loop_exit
      _
    %444 = vsyncpa [#allocation3], 1
    %s445 = scalar_lea.sflag [#allocation3], 1
    %446 = vsyncpa %s445, 1

</llo_original>
